<compile_context>
chip_gen: v7x
topology: tpu7x:2x2x1
jax: 0.10.0
libtpu: 0.0.40
codegen_flags: <defaults>
</compile_context>

<pallas_src>
import jax
import jax.numpy as jnp
from jax import lax
from jax.experimental import pallas as pl
from jax.experimental.pallas import tpu as pltpu


def _round_up(x, m):
    return ((x + m - 1) // m) * m


def _num_tensorcores():
    """2 on v7x (2 TensorCores/chip), else 1. Conservative default: 1."""
    try:
        kind = jax.devices()[0].device_kind.lower()
    except Exception:
        return 1
    return 2 if ("v7" in kind or "tpu7" in kind) else 1


def _make_kernel(rows, tm, steps, pixels, fold_lanes):
    def kernel(o_ref, t_ref, s_ref, loss_ref, acc_ref):
        c = pl.program_id(0)
        i = pl.program_id(1)

        @pl.when(i == 0)
        def _init():
            acc_ref[...] = jnp.zeros(acc_ref.shape, acc_ref.dtype)

        d = o_ref[...].astype(jnp.float32) - t_ref[...].astype(jnp.float32)
        sq = d * d  # (tm, P)

        if fold_lanes:
            # Lane-aligned column fold (pure VALU adds): (tm, P) -> (tm, 128).
            part = sq[:, 0:128]
            for j in range(1, pixels // 128):
                part = part + sq[:, j * 128:(j + 1) * 128]
        else:
            # Cross-lane reduce (XLU, idle in steady state): (tm, P) -> (tm, 1).
            part = jnp.sum(sq, axis=-1, keepdims=True)

        # Rows past the end of the (un-padded) inputs come from out-of-bounds
        # block reads and may be NaN/Inf; NaN*0 != 0, so mask the *product*
        # keyed off the global row index (scale for those rows is garbage too).
        base = (c * steps + i) * tm
        ridx = base + lax.broadcasted_iota(jnp.int32, (tm, 1), 0)
        contrib = jnp.where(ridx < rows,
                            part * s_ref[...].astype(jnp.float32),
                            0.0)
        acc_ref[...] += contrib

        @pl.when(i == steps - 1)
        def _finalize():
            total = jnp.sum(acc_ref[...])  # one final reduce per core slice
            loss_ref[...] = jnp.zeros(loss_ref.shape, loss_ref.dtype) + total

    return kernel


def joints_mse_loss_gaussian(output, target, target_weight):
    """JointsMSELoss forward, 'gaussian' target_type.

    output/target: (B, K, H, W); target_weight: (B, K, 1). Returns scalar f32.
    (Kernel accumulates in f32 regardless of input dtype.)
    """
    B, K, H, W = output.shape
    P = H * W
    rows = B * K

    # Per-row scale (tiny, plain JAX): tw^2 / (sum_k tw * P * B).
    # NOTE: as in the PyTorch module, a batch row with sum(target_weight) == 0
    # yields inf/nan; callers must guarantee positive per-batch weight sums.
    tw = target_weight.reshape(B, K).astype(jnp.float32)
    tw_sum = jnp.sum(tw, axis=1, keepdims=True)                     # (B, 1)
    scale = (tw * tw) / (tw_sum * jnp.float32(P) * jnp.float32(B))
    scale = scale.reshape(rows, 1)

    # Heatmaps go in untouched: native dtype, no padding, metadata-only reshape.
    o2 = output.reshape(rows, P)
    t2 = target.reshape(rows, P)

    itemsize = max(jnp.dtype(output.dtype).itemsize,
                   jnp.dtype(target.dtype).itemsize)

    ncores = _num_tensorcores()

    def _tiling(nc):
        # ~4 MiB input blocks; TM a multiple of 8, capped at 4096 rows.
        cap = max(8, ((4 * 1024 * 1024) // (P * itemsize)) // 8 * 8)
        t = max(8, min(_round_up(pl.cdiv(rows, nc), 8), cap, 4096))
        return t, pl.cdiv(rows, nc * t)

    tm, steps = _tiling(ncores)
    if ncores > 1 and (ncores - 1) * steps * tm >= rows:
        # Not enough rows to give every core fully in-bounds work; fall back.
        ncores = 1
        tm, steps = _tiling(1)

    fold_lanes = (P % 128 == 0)
    lw = 128 if fold_lanes else 1

    # VMEM budget: 2 heatmap inputs x 2 pipeline buffers x block, plus the
    # lane-padded scale blocks, the (tm, lw) accumulator and the output blocks.
    blk = tm * P * itemsize
    est = 4 * blk + 2 * tm * 128 * 4 + tm * lw * 4 + 2 * 8 * 128 * 4
    vmem_limit = int(min(max(32 * 1024 * 1024, est + 8 * 1024 * 1024),
                         120 * 1024 * 1024))

    row_map = lambda c, i: (c * steps + i, 0)

    if ncores > 1:
        dim_sem = (getattr(pltpu, "CORE_PARALLEL", "parallel"),
                   getattr(pltpu, "ARBITRARY", "arbitrary"))
    else:
        dim_sem = ("arbitrary", "arbitrary")

    kernel = _make_kernel(rows, tm, steps, P, fold_lanes)

    partials = pl.pallas_call(
        kernel,
        out_shape=jax.ShapeDtypeStruct((ncores, 8, 128), jnp.float32),
        grid_spec=pltpu.PrefetchScalarGridSpec(
            num_scalar_prefetch=0,
            grid=(ncores, steps),
            in_specs=[
                pl.BlockSpec((tm, P), row_map),
                pl.BlockSpec((tm, P), row_map),
                pl.BlockSpec((tm, 1), row_map),
            ],
            out_specs=pl.BlockSpec((1, 8, 128), lambda c, i: (c, 0, 0)),
            scratch_shapes=[pltpu.VMEM((tm, lw), jnp.float32)],
        ),
        compiler_params=pltpu.CompilerParams(
            dimension_semantics=dim_sem,
            vmem_limit_bytes=vmem_limit,
        ),
    )(o2, t2, scale)

    # Each core slice broadcasts its partial into a lane-dense (8,128) block;
    # take one element per core and sum the (<= 2) partials in plain JAX.
    return jnp.sum(partials[:, 0, 0])


def _reference_loss(output, target, target_weight):
    """Pure-JAX transcription of the PyTorch 'gaussian' branch."""
    B, K, H, W = output.shape
    P = H * W
    pred = output.reshape(B, K, P)
    gt = target.reshape(B, K, P)
    sum_mse = ((((pred - gt) * target_weight) ** 2).reshape(B, -1) / P
               ).sum(axis=1, keepdims=True)
    return (sum_mse / target_weight.sum(axis=1)).sum() / B


# TODO(synk): the 'coordinate' target_type branch (needs cfg.MODEL.HEATMAP_SIZE)
# is not wired up; only the 'gaussian' branch is implemented as a kernel.

if __name__ == "__main__":
    key = jax.random.PRNGKey(0)
    k1, k2, k3 = jax.random.split(key, 3)

    # Primary case: rows divisible by the tile (no masked tail).
    B, K, H, W = 2, 4, 16, 16
    output = jax.random.normal(k1, (B, K, H, W), dtype=jnp.float32)
    target = jax.random.normal(k2, (B, K, H, W), dtype=jnp.float32)
    target_weight = jax.random.uniform(
        k3, (B, K, 1), dtype=jnp.float32, minval=0.1, maxval=1.0)

    loss = joints_mse_loss_gaussian(output, target, target_weight)
    loss = jax.block_until_ready(loss)
    ref = _reference_loss(output, target, target_weight)
    assert jnp.allclose(loss, ref, rtol=1e-5, atol=1e-6), (loss, ref)

    # Ragged case: rows (= B*K = 6) not a multiple of 8 exercises the in-kernel
    # row mask / partial-block path that replaced the wrapper-side jnp.pad.
    Br, Kr = 2, 3
    out_r = jax.random.normal(k1, (Br, Kr, H, W), dtype=jnp.float32)
    tgt_r = jax.random.normal(k2, (Br, Kr, H, W), dtype=jnp.float32)
    tw_r = jax.random.uniform(
        k3, (Br, Kr, 1), dtype=jnp.float32, minval=0.1, maxval=1.0)

    loss_r = joints_mse_loss_gaussian(out_r, tgt_r, tw_r)
    loss_r = jax.block_until_ready(loss_r)
    ref_r = _reference_loss(out_r, tgt_r, tw_r)
    assert jnp.allclose(loss_r, ref_r, rtol=1e-5, atol=1e-6), (loss_r, ref_r)

    print("KERNEL_OK")
</pallas_src>

<mosaic_0001>
module attributes {stable_mosaic.version = 11 : i64} {
  func.func @kernel(%arg0: i32, %arg1: i32, %arg2: memref<8x256xf32, #tpu.memory_space<vmem>>, %arg3: memref<8x256xf32, #tpu.memory_space<vmem>>, %arg4: memref<8x1xf32, #tpu.memory_space<vmem>>, %arg5: memref<1x8x128xf32, #tpu.memory_space<vmem>>, %arg6: memref<8x128xf32, #tpu.memory_space<vmem>>) attributes {dimension_semantics = [#tpu.dimension_semantics<arbitrary>, #tpu.dimension_semantics<arbitrary>], iteration_bounds = array<i64: 1, 1>, scalar_prefetch = 0 : i64, scratch_operands = 1 : i64, tpu.core_type = #tpu.core_type<tc>, window_params = [{transform_indices = @transform_0, window_bounds = array<i64: 8, 256>}, {transform_indices = @transform_1, window_bounds = array<i64: 8, 256>}, {transform_indices = @transform_2, window_bounds = array<i64: 8, 1>}, {transform_indices = @transform_3, window_bounds = array<i64: 1, 8, 128>}]} {
    %c0_i32 = arith.constant 0 : i32
    %0 = arith.cmpi eq, %arg1, %c0_i32 : i32
    %1 = arith.extui %0 : i1 to i32
    %c0_i32_0 = arith.constant 0 : i32
    %2 = arith.cmpi ne, %1, %c0_i32_0 : i32
    scf.if %2 {
      %cst_13 = arith.constant 0.000000e+00 : f32
      %31 = vector.broadcast %cst_13 : f32 to vector<8x128xf32>
      %c0_14 = arith.constant 0 : index
      %c0_15 = arith.constant 0 : index
      %32 = vector.load %arg6[%c0_14, %c0_15] : memref<8x128xf32, #tpu.memory_space<vmem>>, vector<8x128xf32>
      tpu.vector_store %arg6[%c0_14, %c0_15], %31 {strides = array<i32>} : memref<8x128xf32, #tpu.memory_space<vmem>>, vector<8x128xf32>,
    } else {
    }
    %c0 = arith.constant 0 : index
    %c0_1 = arith.constant 0 : index
    %3 = vector.load %arg2[%c0, %c0_1] : memref<8x256xf32, #tpu.memory_space<vmem>>, vector<8x256xf32>
    %c0_2 = arith.constant 0 : index
    %c0_3 = arith.constant 0 : index
    %4 = vector.load %arg3[%c0_2, %c0_3] : memref<8x256xf32, #tpu.memory_space<vmem>>, vector<8x256xf32>
    %5 = arith.subf %3, %4 : vector<8x256xf32>
    %6 = arith.mulf %5, %5 : vector<8x256xf32>
    %7 = vector.extract_strided_slice %6 {offsets = [0, 0], sizes = [8, 128], strides = [1, 1]} : vector<8x256xf32> to vector<8x128xf32>
    %8 = vector.extract_strided_slice %6 {offsets = [0, 128], sizes = [8, 128], strides = [1, 1]} : vector<8x256xf32> to vector<8x128xf32>
    %9 = arith.addf %7, %8 : vector<8x128xf32>
    %c1_i32 = arith.constant 1 : i32
    %10 = arith.muli %arg0, %c1_i32 : i32
    %11 = arith.addi %10, %arg1 : i32
    %c8_i32 = arith.constant 8 : i32
    %12 = arith.muli %11, %c8_i32 : i32
    %13 = tpu.iota {dimensions = array<i32: 0>} : vector<8x1xi32>
    %14 = vector.broadcast %12 : i32 to vector<8x1xi32>
    %15 = arith.addi %14, %13 : vector<8x1xi32>
    %c8_i32_4 = arith.constant 8 : i32
    %16 = vector.broadcast %c8_i32_4 : i32 to vector<8x1xi32>
    %17 = arith.cmpi slt, %15, %16 : vector<8x1xi32>
    %c0_5 = arith.constant 0 : index
    %c0_6 = arith.constant 0 : index
    %18 = vector.load %arg4[%c0_5, %c0_6] : memref<8x1xf32, #tpu.memory_space<vmem>>, vector<8x1xf32>
    %19 = vector.broadcast %18 : vector<8x1xf32> to vector<8x128xf32>
    %20 = arith.mulf %9, %19 : vector<8x128xf32>
    %cst = arith.constant 0.000000e+00 : f32
    %21 = vector.shape_cast %17 : vector<8x1xi1> to vector<8x1xi1>
    %22 = vector.broadcast %21 : vector<8x1xi1> to vector<8x128xi1>
    %23 = vector.broadcast %cst : f32 to vector<8x128xf32>
    %24 = arith.select %22, %20, %23 : vector<8x128xi1>, vector<8x128xf32>
    %c0_7 = arith.constant 0 : index
    %c0_8 = arith.constant 0 : index
    %25 = vector.load %arg6[%c0_7, %c0_8] : memref<8x128xf32, #tpu.memory_space<vmem>>, vector<8x128xf32>
    %26 = arith.addf %25, %24 : vector<8x128xf32>
    %c0_9 = arith.constant 0 : index
    %c0_10 = arith.constant 0 : index
    %27 = vector.load %arg6[%c0_9, %c0_10] : memref<8x128xf32, #tpu.memory_space<vmem>>, vector<8x128xf32>
    tpu.vector_store %arg6[%c0_9, %c0_10], %26 {strides = array<i32>} : memref<8x128xf32, #tpu.memory_space<vmem>>, vector<8x128xf32>,
    %c0_i32_11 = arith.constant 0 : i32
    %28 = arith.cmpi eq, %arg1, %c0_i32_11 : i32
    %29 = arith.extui %28 : i1 to i32
    %c0_i32_12 = arith.constant 0 : i32
    %30 = arith.cmpi ne, %29, %c0_i32_12 : i32
    scf.if %30 {
      %c0_13 = arith.constant 0 : index
      %c0_14 = arith.constant 0 : index
      %31 = vector.load %arg6[%c0_13, %c0_14] : memref<8x128xf32, #tpu.memory_space<vmem>>, vector<8x128xf32>
      %32 = vector.shape_cast %31 : vector<8x128xf32> to vector<1x8x128xf32>
      %cst_15 = arith.constant dense<0.000000e+00> : vector<1xf32>
      %33 = vector.multi_reduction <add>, %32, %cst_15 [1, 2] : vector<1x8x128xf32> to vector<1xf32>
      %34 = vector.shape_cast %33 : vector<1xf32> to vector<1x1x1xf32>
      %35 = vector.extract %34[0, 0, 0] : f32 from vector<1x1x1xf32>
      %cst_16 = arith.constant 0.000000e+00 : f32
      %36 = vector.broadcast %cst_16 : f32 to vector<1x8x128xf32>
      %37 = vector.broadcast %35 : f32 to vector<1x8x128xf32>
      %38 = arith.addf %36, %37 : vector<1x8x128xf32>
      %c0_17 = arith.constant 0 : index
      %c0_18 = arith.constant 0 : index
      %c0_19 = arith.constant 0 : index
      %39 = vector.load %arg5[%c0_17, %c0_18, %c0_19] : memref<1x8x128xf32, #tpu.memory_space<vmem>>, vector<1x8x128xf32>
      tpu.vector_store %arg5[%c0_17, %c0_18, %c0_19], %38 {strides = array<i32>} : memref<1x8x128xf32, #tpu.memory_space<vmem>>, vector<1x8x128xf32>,
    } else {
    }
    return
  }
  func.func @transform_0(%arg0: i32, %arg1: i32) -> (i32, i32) {
    %c1_i32 = arith.constant 1 : i32
    %0 = arith.muli %arg0, %c1_i32 : i32
    %1 = arith.addi %0, %arg1 : i32
    %c0_i32 = arith.constant 0 : i32
    %c0_i32_0 = arith.constant 0 : i32
    return %1, %c0_i32 : i32, i32
  }
  func.func @transform_1(%arg0: i32, %arg1: i32) -> (i32, i32) {
    %c1_i32 = arith.constant 1 : i32
    %0 = arith.muli %arg0, %c1_i32 : i32
    %1 = arith.addi %0, %arg1 : i32
    %c0_i32 = arith.constant 0 : i32
    %c0_i32_0 = arith.constant 0 : i32
    return %1, %c0_i32 : i32, i32
  }
  func.func @transform_2(%arg0: i32, %arg1: i32) -> (i32, i32) {
    %c1_i32 = arith.constant 1 : i32
    %0 = arith.muli %arg0, %c1_i32 : i32
    %1 = arith.addi %0, %arg1 : i32
    %c0_i32 = arith.constant 0 : i32
    %c0_i32_0 = arith.constant 0 : i32
    return %1, %c0_i32 : i32, i32
  }
  func.func @transform_3(%arg0: i32, %arg1: i32) -> (i32, i32, i32) {
    %c0_i32 = arith.constant 0 : i32
    %c0_i32_0 = arith.constant 0 : i32
    %c0_i32_1 = arith.constant 0 : i32
    return %arg0, %c0_i32, %c0_i32_0 : i32, i32, i32
  }
}

</mosaic_0001>

<llo_original>
// kernel: tpu_custom_call.1
$region0: #{tpu_custom_call.1}
  #allocation0 [shape = 'u32[]', space=smem, size = 0x4, offset = 0x4, fixed_abs, tag = 'smem constant byte address 0x4 - core index']
  #allocation1 [shape = 'u32[144,128]{1,0:T(1,128)}', space=vmem, size = 0x12000, scoped, tag = 'internal scratch']
  #allocation2 [shape = 'f32[8,128]{1,0:T(8,128)}', space=vmem, size = 0x1000, scoped, tag = 'scratch operand']
  %s0 = inlined_call_operand.hbm [shape: f32[8,256], index: 0, kind: input, shape index: {}]
  %s1 = inlined_call_operand.hbm [shape: f32[8,256], index: 1, kind: input, shape index: {}]
  %s2 = inlined_call_operand.vmem [shape: f32[8,1], index: 2, kind: input, shape index: {}]
  %s3 = inlined_call_operand.hbm [shape: f32[1,8,128], index: 3, kind: output, shape index: {}]
  %s4 = sld [smem:[#allocation0]]
  $region38: #{tpu_custom_call.1} parent=0
    _
  %s6 = ssub.s32 1, %s4
  %s7 = scalar_select 0, %s6, %s4
  $region1: #{tpu_custom_call.1} parent=0
    #allocation3 [shape = 'u8[8192]{0}', space=vmem, size = 0x2000, scoped, tag = 'input window, operand 0, single buffered']
    #allocation4 [shape = 's32[1]{0}', space=sflag, size = 0x4, scoped, tag = 'scoped memory for tpu_custom_call.1']
    #allocation5 [shape = 's32[1]{0}', space=sflag, size = 0x4, scoped, tag = 'scoped memory for tpu_custom_call.1']
    #allocation6 [shape = 'u8[8192]{0}', space=vmem, size = 0x2000, scoped, tag = 'input window, operand 1, single buffered']
    #allocation7 [shape = 's32[1]{0}', space=sflag, size = 0x4, scoped, tag = 'scoped memory for tpu_custom_call.1']
    #allocation8 [shape = 'u8[4096]{0}', space=vmem, size = 0x1000, scoped, tag = 'output window, operand 0, single buffered']
    %8 = vsyncpa [#allocation4], 0
    %9 = vsyncpa [#allocation7], 0
    %10 = vsyncpa [#allocation5], 0
    // Predicated region
    $region2: #{tpu_custom_call.1} parent=1 // pred_check
      _
    $region3: #{tpu_custom_call.1} parent=1 // pred_check_branch
      %12 = sbr.rel (0) target = $region5
    $region4: #{tpu_custom_call.1} parent=1 // pred_region
      %s13 = sadd.s32 0, 0
      %s15 = ssub.s32 256, 256
      %16 = vsyncadd [#allocation4], %s15
      %s17 = smul.addr %s13, 2
      %s18 = smul.addr %s17, 128
      %s19 = scalar_lea.hbm %s0, %s18
      %s21 = sshll.u32 [#allocation3], 4
      %s22 = int_to_ptr.vmem [resolvable:$true] %s21
      %24 = dma.hbm_to_vmem [thread:$0]  %s19, 256, %s22, [#allocation4]
    $region5: #{tpu_custom_call.1} parent=1 // pred_fallthru
      _
    // Predicated region
    $region6: #{tpu_custom_call.1} parent=1 // pred_check
      _
    $region7: #{tpu_custom_call.1} parent=1 // pred_check_branch
      %26 = sbr.rel (0) target = $region9
    $region8: #{tpu_custom_call.1} parent=1 // pred_region
      %s27 = sadd.s32 0, 0
      %s29 = ssub.s32 256, 256
      %30 = vsyncadd [#allocation7], %s29
      %s31 = smul.addr %s27, 2
      %s32 = smul.addr %s31, 128
      %s33 = scalar_lea.hbm %s1, %s32
      %s35 = sshll.u32 [#allocation6], 4
      %s36 = int_to_ptr.vmem [resolvable:$true] %s35
      %38 = dma.hbm_to_vmem [thread:$0]  %s33, 256, %s36, [#allocation7]
    $region9: #{tpu_custom_call.1} parent=1 // pred_fallthru
      _
    // Predicated region
    $region10: #{tpu_custom_call.1} parent=1 // pred_check
      _
    $region11: #{tpu_custom_call.1} parent=1 // pred_check_branch
      %40 = sbr.rel (0) target = $region13
    $region12: #{tpu_custom_call.1} parent=1 // pred_region
      %s41 = sadd.s32 0, 0
      %p42 = scmp.lt.s32.totalorder %s41, 0
      %s43 = scalar_select %p42, %s41, 0
      %s44 = smul.addr %s43, 8
      %s45 = scalar_lea.vmem %s2, %s44
      %s46 = sadd.s32 0, 0
    $region13: #{tpu_custom_call.1} parent=1 // pred_fallthru
      _
    // Predicated region
    $region14: #{tpu_custom_call.1} parent=1 // pred_check
      _
    $region15: #{tpu_custom_call.1} parent=1 // pred_check_branch
      %48 = sbr.rel (0) target = $region17
    $region16: #{tpu_custom_call.1} parent=1 // pred_region
      %49 = dma.done [#allocation4], 256
    $region17: #{tpu_custom_call.1} parent=1 // pred_fallthru
      _
    // Predicated region
    $region18: #{tpu_custom_call.1} parent=1 // pred_check
      _
    $region19: #{tpu_custom_call.1} parent=1 // pred_check_branch
      %51 = sbr.rel (0) target = $region21
    $region20: #{tpu_custom_call.1} parent=1 // pred_region
      %52 = dma.done [#allocation7], 256
    $region21: #{tpu_custom_call.1} parent=1 // pred_fallthru
      _
    %s53 = sadd.s32 0, 0
    %p54 = scmp.lt.s32.totalorder %s53, 0
    %s55 = scalar_select %p54, %s53, 0
    %s56 = smul.addr %s55, 8
    %s57 = scalar_lea.vmem %s2, %s56
    %s58 = sadd.s32 0, 0
    %s59 = sadd.s32 0, 0
    %s60 = sadd.s32 0, 0
    %p61 = scmp.lt.s32.totalorder %s60, 0
    %s62 = scalar_select %p61, %s60, 0
    %s63 = smul.addr %s62, 8
    %s64 = scalar_lea.vmem %s2, %s63
    %s65 = sadd.s32 0, 0
    %p66 = scmp.eq.s32.totalorder 0, 0
    // Predicated region
    $region22: #{tpu_custom_call.1} parent=1 // pred_check
      %p67 = pneg %p66
    $region23: #{tpu_custom_call.1} parent=1 // pred_check_branch
      %69 = sbr.rel (%p67) target = $region25
    $region24: #{tpu_custom_call.1} parent=1 // pred_region
      %70 = vst [vmem:[#allocation2] sm:$0xff] 0.0
    $region25: #{tpu_custom_call.1} parent=1 // pred_fallthru
      _
    %v71 = vld [vmem:[#allocation3] sm:$0xff]
    %v72 = vld [vmem:[#allocation3 + $0x8] sm:$0xff]
    %v73 = vld [vmem:[#allocation6] sm:$0xff]
    %v74 = vld [vmem:[#allocation6 + $0x8] sm:$0xff]
    %v75 = vsub.f32 %v71, %v73
    %v76 = vsub.f32 %v72, %v74
    %v77 = vmul.f32 %v75, %v75
    %v78 = vmul.f32 %v76, %v76
    %v79 = vadd.f32 %v77, %v78
    %s80 = sadd.s32 0, 0
    %s81 = smul.u32 %s80, 8
    %v82 = vlaneseq
    %v83 = vshrl.u32 %v82, 7
    %v84 = vstv %s81
    %v85 = vadd.s32 %v84, %v83
    %vm86 = vcmp.lt.s32.totalorder %v85, 8
    %v87 = vld [vmem:[%s64] sm:$0xff]
    %89 = vset.pattern.permute.xlu0 0
    %90 = vperm.xlu0 %89, %v87
    %v91 = vpop.permute.xlu0 %90
    %v93 = vmul.f32 %v79, %v91
    %v94 = vsel %vm86, 1, 0
    %vm95 = vcmp.eq.s32.totalorder %v94, 1
    %v96 = vsel %vm95, %v93, 0.0
    %v97 = vld [vmem:[#allocation2] sm:$0xff]
    %v98 = vadd.f32 %v97, %v96
    %99 = vst [vmem:[#allocation2] sm:$0xff] %v98
    // Predicated region
    $region26: #{tpu_custom_call.1} parent=1 // pred_check
      %p100 = pneg %p66
    $region27: #{tpu_custom_call.1} parent=1 // pred_check_branch
      %102 = sbr.rel (%p100) target = $region29
    $region28: #{tpu_custom_call.1} parent=1 // pred_region
      %v103 = vld [vmem:[#allocation2] sm:$0xff]
      %104 = vadd.xlane.f32.xlu0 %v103
      %v105 = vpop.xlane.xlu0 %104
      %v106 = vrot.slane %v105, 4
      %v107 = vadd.f32 %v105, %v106
      %v108 = vrot.slane %v107, 2
      %v109 = vadd.f32 %v107, %v108
      %v110 = vrot.slane %v109, 1
      %v111 = vadd.f32 %v109, %v110
      %s112 = vtos %v111
      %v113 = vstv %s112
      %v114 = vadd.f32 %v113, 0.0
      %115 = vst [vmem:[#allocation8] sm:$0xff] %v114
    $region29: #{tpu_custom_call.1} parent=1 // pred_fallthru
      _
    // Predicated region
    $region30: #{tpu_custom_call.1} parent=1 // pred_check
      _
    $region31: #{tpu_custom_call.1} parent=1 // pred_check_branch
      %117 = sbr.rel (0) target = $region33
    $region32: #{tpu_custom_call.1} parent=1 // pred_region
      %s119 = ssub.s32 128, 128
      %120 = vsyncadd [#allocation5], %s119
      %s122 = sshll.u32 [#allocation8], 4
      %s123 = int_to_ptr.vmem [resolvable:$true] %s122
      %125 = dma.vmem_to_hbm [thread:$0]  %s123, 128, %s3, [#allocation5]
    $region33: #{tpu_custom_call.1} parent=1 // pred_fallthru
      _
    // Predicated region
    $region34: #{tpu_custom_call.1} parent=1 // pred_check
      _
    $region35: #{tpu_custom_call.1} parent=1 // pred_check_branch
      %127 = sbr.rel (0) target = $region37
    $region36: #{tpu_custom_call.1} parent=1 // pred_region
      %128 = dma.done [#allocation5], 128
    $region37: #{tpu_custom_call.1} parent=1 // pred_fallthru
      _
    %129 = vsyncpa [#allocation4], 1
    %130 = vsyncpa [#allocation7], 1
    %131 = vsyncpa [#allocation5], 1

</llo_original>
